<compile_context>
chip_gen: v7x
topology: tpu7x:2x2x1
jax: 0.10.0
libtpu: 0.0.40
codegen_flags: <defaults>
</compile_context>

<pallas_src>
import functools

import numpy as np

import jax
import jax.numpy as jnp
from jax.experimental import pallas as pl
from jax.experimental.pallas import tpu as pltpu


# ----------------------------------------------------------------------------
# Interpolation weight matrices (host-side numpy; folded to constants by jit).
# ----------------------------------------------------------------------------
def _bilinear_matrix(out_size: int, in_size: int) -> np.ndarray:
    """PyTorch bilinear (align_corners=False) 1-D interpolation matrix."""
    dst = np.arange(out_size, dtype=np.float64)
    scale = in_size / out_size
    src = (dst + 0.5) * scale - 0.5
    src = np.maximum(src, 0.0)
    i0 = np.minimum(np.floor(src).astype(np.int64), in_size - 1)
    i1 = np.minimum(i0 + 1, in_size - 1)
    w1 = src - i0
    w0 = 1.0 - w1
    w = np.zeros((out_size, in_size), dtype=np.float64)
    rows = np.arange(out_size)
    np.add.at(w, (rows, i0), w0)
    np.add.at(w, (rows, i1), w1)
    return w


def _nearest_matrix(out_size: int, in_size: int) -> np.ndarray:
    """PyTorch legacy 'nearest' 1-D selection matrix (floor(dst*scale)).

    Note: this matches F.interpolate(mode='nearest'); 'nearest-exact' would
    use a different source-index formula.
    """
    dst = np.arange(out_size, dtype=np.float64)
    scale = in_size / out_size
    src = np.minimum(np.floor(dst * scale).astype(np.int64), in_size - 1)
    w = np.zeros((out_size, in_size), dtype=np.float64)
    w[np.arange(out_size), src] = 1.0
    return w


# ----------------------------------------------------------------------------
# Pallas kernel: one batch item x one H_out row-block per grid step.
#   wh_ref : (2, h_blk, H_in)  f32  plane 0 = bilinear, plane 1 = nearest
#   wwt_ref: (2, W_in, W_out)  f32  (pre-transposed W weights)
#   x_ref  : (C, H_in, W_in)   input dtype
#   o_ref  : (C, h_blk, W_out) output dtype
# Channel groups (image / mask) are static slices; each uses its own plane.
# ----------------------------------------------------------------------------
def _resize_kernel(wh_ref, wwt_ref, x_ref, o_ref, *, n_im, n_ch, fuse_w):
    x = x_ref[...].astype(jnp.float32)                   # (C, H_in, W_in)
    _, h_in, w_in = x_ref.shape
    w_out = o_ref.shape[-1]

    def resize_group(c0, cg, plane):
        wh = wh_ref[plane]                               # (h_blk, H_in)
        wwt = wwt_ref[plane]                             # (W_in, W_out)
        xg = x[c0:c0 + cg]                               # (cg, H_in, W_in) static slice
        if fuse_w:
            # W-resize fused over the whole channel group: one big MXU matmul.
            xw = jnp.dot(xg.reshape(cg * h_in, w_in), wwt,
                         preferred_element_type=jnp.float32)
            xw = xw.reshape(cg, h_in, w_out)             # (cg, H_in, W_out)
        else:
            xw = None
        # H-resize per channel (static unrolled loop, cg is small).
        for ci in range(cg):
            t = (xw[ci] if fuse_w
                 else jnp.dot(xg[ci], wwt, preferred_element_type=jnp.float32))
            o_ref[c0 + ci] = jnp.dot(
                wh, t, preferred_element_type=jnp.float32).astype(o_ref.dtype)

    if n_im > 0:
        resize_group(0, n_im, 0)
    if n_ch - n_im > 0:
        resize_group(n_im, n_ch - n_im, 1)


# ----------------------------------------------------------------------------
# H_out tile + VMEM sizing (sizes in bytes).
# ----------------------------------------------------------------------------
def _pick_h_block(n_ch, h_in, w_in, h_out, w_out, itemsize):
    budget = 12 * 1024 * 1024
    fixed = (2 * n_ch * h_in * w_in * itemsize          # x block, double buffered
             + n_ch * h_in * w_in * 4                   # in-kernel f32 copy of x
             + 2 * 2 * w_in * w_out * 4                 # wwt block, double buffered
             + n_ch * h_in * w_out * 4)                 # fused W-resize intermediate
    per_row = 2 * n_ch * w_out * itemsize + 2 * 2 * h_in * 4   # out + wh per H_out row
    if h_out <= 8 or fixed + h_out * per_row <= budget:
        return h_out, fixed + h_out * per_row
    rows = (budget - fixed) // per_row if budget > fixed else 8
    rows = max(8, (int(rows) // 8) * 8)                 # multiple of 8 for the BlockSpec
    h_blk = int(min(rows, h_out))
    return h_blk, fixed + h_blk * per_row


# ----------------------------------------------------------------------------
# Module-equivalent wrapper.
# ----------------------------------------------------------------------------
@functools.partial(jax.jit, static_argnames=("size", "n_im_channels"))
def resize_forward(batch, size, n_im_channels=1):
    """Equivalent of resize(size, is_2d=True, n_im_channels).forward(batch)."""
    if len(size) != 2:
        raise NotImplementedError(
            "Only the 2D (is_2d=True, bilinear) branch is implemented.")
    h_out, w_out = int(size[0]), int(size[1])
    n, c, h_in, w_in = batch.shape
    n_im = int(n_im_channels)

    # Stacked 1-D interpolation matrices: plane 0 = bilinear (image channels),
    # plane 1 = legacy 'nearest' (mask channels).  Ww is pre-transposed.
    wh = jnp.asarray(
        np.stack([_bilinear_matrix(h_out, h_in), _nearest_matrix(h_out, h_in)]),
        dtype=jnp.float32)                                        # (2, H_out, H_in)
    wwt = jnp.asarray(
        np.stack([np.ascontiguousarray(_bilinear_matrix(w_out, w_in).T),
                  np.ascontiguousarray(_nearest_matrix(w_out, w_in).T)]),
        dtype=jnp.float32)                                        # (2, W_in, W_out)

    itemsize = jnp.dtype(batch.dtype).itemsize
    h_blk, vmem_est = _pick_h_block(c, h_in, w_in, h_out, w_out, itemsize)
    n_h = pl.cdiv(h_out, h_blk)
    # Size-derived limit, clamped to the smallest physical VMEM (v7x: 64 MiB).
    vmem_limit = int(min(64 * 1024 * 1024,
                         max(16 * 1024 * 1024, 2 * vmem_est)))

    kernel = functools.partial(_resize_kernel, n_im=n_im, n_ch=c,
                               fuse_w=(h_in % 8 == 0))

    return pl.pallas_call(
        kernel,
        out_shape=jax.ShapeDtypeStruct((n, c, h_out, w_out), batch.dtype),
        grid_spec=pltpu.PrefetchScalarGridSpec(
            num_scalar_prefetch=0,
            grid=(n, n_h),
            in_specs=[
                # both weight planes; wh sliced per H_out row-block.
                pl.BlockSpec((2, h_blk, h_in), lambda i, j: (0, j, 0)),
                pl.BlockSpec((2, w_in, w_out), lambda i, j: (0, 0, 0)),
                # full-channel input slice of one batch item (batch dim squeezed).
                pl.BlockSpec((None, c, h_in, w_in), lambda i, j: (i, 0, 0, 0)),
            ],
            out_specs=pl.BlockSpec((None, c, h_blk, w_out),
                                   lambda i, j: (i, 0, j, 0)),
        ),
        compiler_params=pltpu.CompilerParams(
            dimension_semantics=("parallel", "parallel"),
            vmem_limit_bytes=vmem_limit,
        ),
    )(wh, wwt, batch)


if __name__ == "__main__":
    key = jax.random.PRNGKey(0)
    # batch = [image (1 channel) | mask (3 channels)], NCHW
    x = jax.random.normal(key, (2, 4, 16, 16), dtype=jnp.float32)

    out = resize_forward(x, size=(24, 20), n_im_channels=1)
    out = jax.block_until_ready(out)

    assert out.shape == (2, 4, 24, 20), out.shape
    assert out.dtype == x.dtype

    # Pure-JAX reference built from the same interpolation matrices.
    wh_bi = jnp.asarray(_bilinear_matrix(24, 16), jnp.float32)
    ww_bi = jnp.asarray(_bilinear_matrix(20, 16), jnp.float32)
    wh_nn = jnp.asarray(_nearest_matrix(24, 16), jnp.float32)
    ww_nn = jnp.asarray(_nearest_matrix(20, 16), jnp.float32)
    hp = jax.lax.Precision.HIGHEST
    ref_im = jnp.einsum("ph,nchw,qw->ncpq", wh_bi, x[:, :1], ww_bi, precision=hp)
    ref_mk = jnp.einsum("ph,nchw,qw->ncpq", wh_nn, x[:, 1:], ww_nn, precision=hp)
    ref = jnp.concatenate([ref_im, ref_mk], axis=1)
    max_err = float(jnp.max(jnp.abs(out - ref)))
    assert max_err < 3e-2, max_err
    assert bool(jnp.all(jnp.isfinite(out)))
    print("KERNEL_OK")
</pallas_src>

<mosaic_0001>
module attributes {stable_mosaic.version = 11 : i64} {
  func.func @_resize_kernel(%arg0: i32, %arg1: i32, %arg2: memref<2x24x16xf32, #tpu.memory_space<vmem>>, %arg3: memref<2x16x20xf32, #tpu.memory_space<vmem>>, %arg4: memref<1x4x16x16xf32, #tpu.memory_space<vmem>>, %arg5: memref<1x4x24x20xf32, #tpu.memory_space<vmem>>) attributes {dimension_semantics = [#tpu.dimension_semantics<parallel>, #tpu.dimension_semantics<parallel>], iteration_bounds = array<i64: 2, 1>, scalar_prefetch = 0 : i64, scratch_operands = 0 : i64, tpu.core_type = #tpu.core_type<tc>, window_params = [{transform_indices = @transform_0, window_bounds = array<i64: 2, 24, 16>}, {pipeline_mode = #tpu.pipeline_mode<synchronous>, transform_indices = @transform_1, window_bounds = array<i64: 2, 16, 20>}, {transform_indices = @transform_2, window_bounds = array<i64: 1, 4, 16, 16>}, {transform_indices = @transform_3, window_bounds = array<i64: 1, 4, 24, 20>}]} {
    %c0 = arith.constant 0 : index
    %c0_0 = arith.constant 0 : index
    %c0_1 = arith.constant 0 : index
    %c0_2 = arith.constant 0 : index
    %0 = vector.load %arg4[%c0, %c0_0, %c0_1, %c0_2] : memref<1x4x16x16xf32, #tpu.memory_space<vmem>>, vector<1x4x16x16xf32>
    %1 = vector.shape_cast %0 : vector<1x4x16x16xf32> to vector<4x16x16xf32>
    %c0_3 = arith.constant 0 : index
    %c0_4 = arith.constant 0 : index
    %c0_5 = arith.constant 0 : index
    %2 = vector.load %arg2[%c0_3, %c0_4, %c0_5] : memref<2x24x16xf32, #tpu.memory_space<vmem>>, vector<1x24x16xf32>
    %3 = vector.shape_cast %2 : vector<1x24x16xf32> to vector<24x16xf32>
    %c0_6 = arith.constant 0 : index
    %c0_7 = arith.constant 0 : index
    %c0_8 = arith.constant 0 : index
    %4 = vector.load %arg3[%c0_6, %c0_7, %c0_8] : memref<2x16x20xf32, #tpu.memory_space<vmem>>, vector<1x16x20xf32>
    %5 = vector.shape_cast %4 : vector<1x16x20xf32> to vector<16x20xf32>
    %6 = vector.extract_strided_slice %1 {offsets = [0, 0, 0], sizes = [1, 16, 16], strides = [1, 1, 1]} : vector<4x16x16xf32> to vector<1x16x16xf32>
    %7 = vector.shape_cast %6 : vector<1x16x16xf32> to vector<16x16xf32>
    %cst = arith.constant dense<0.000000e+00> : vector<16x20xf32>
    %8 = tpu.matmul %7, %5, %cst {dimension_numbers = #tpu.dot_dimension_numbers<[1], [0], [0], [1], [0, 0, 1, 1], [], []>} : vector<16x16xf32>, vector<16x20xf32>, vector<16x20xf32> -> vector<16x20xf32>
    %9 = vector.shape_cast %8 : vector<16x20xf32> to vector<1x16x20xf32>
    %10 = vector.shape_cast %9 : vector<1x16x20xf32> to vector<16x20xf32>
    %cst_9 = arith.constant dense<0.000000e+00> : vector<24x20xf32>
    %11 = tpu.matmul %3, %10, %cst_9 {dimension_numbers = #tpu.dot_dimension_numbers<[1], [0], [0], [1], [0, 0, 1, 1], [], []>} : vector<24x16xf32>, vector<16x20xf32>, vector<24x20xf32> -> vector<24x20xf32>
    %c0_10 = arith.constant 0 : index
    %c0_11 = arith.constant 0 : index
    %c0_12 = arith.constant 0 : index
    %c0_13 = arith.constant 0 : index
    %12 = vector.load %arg5[%c0_10, %c0_11, %c0_12, %c0_13] : memref<1x4x24x20xf32, #tpu.memory_space<vmem>>, vector<1x1x24x20xf32>
    %13 = vector.shape_cast %12 : vector<1x1x24x20xf32> to vector<24x20xf32>
    %14 = vector.shape_cast %11 : vector<24x20xf32> to vector<1x1x24x20xf32>
    tpu.vector_store %arg5[%c0_10, %c0_11, %c0_12, %c0_13], %14 {strides = array<i32>} : memref<1x4x24x20xf32, #tpu.memory_space<vmem>>, vector<1x1x24x20xf32>,
    %c1 = arith.constant 1 : index
    %c0_14 = arith.constant 0 : index
    %c0_15 = arith.constant 0 : index
    %15 = vector.load %arg2[%c1, %c0_14, %c0_15] : memref<2x24x16xf32, #tpu.memory_space<vmem>>, vector<1x24x16xf32>
    %16 = vector.shape_cast %15 : vector<1x24x16xf32> to vector<24x16xf32>
    %c1_16 = arith.constant 1 : index
    %c0_17 = arith.constant 0 : index
    %c0_18 = arith.constant 0 : index
    %17 = vector.load %arg3[%c1_16, %c0_17, %c0_18] : memref<2x16x20xf32, #tpu.memory_space<vmem>>, vector<1x16x20xf32>
    %18 = vector.shape_cast %17 : vector<1x16x20xf32> to vector<16x20xf32>
    %19 = vector.extract_strided_slice %1 {offsets = [1, 0, 0], sizes = [3, 16, 16], strides = [1, 1, 1]} : vector<4x16x16xf32> to vector<3x16x16xf32>
    %20 = vector.shape_cast %19 : vector<3x16x16xf32> to vector<48x16xf32>
    %cst_19 = arith.constant dense<0.000000e+00> : vector<48x20xf32>
    %21 = tpu.matmul %20, %18, %cst_19 {dimension_numbers = #tpu.dot_dimension_numbers<[1], [0], [0], [1], [0, 0, 1, 1], [], []>} : vector<48x16xf32>, vector<16x20xf32>, vector<48x20xf32> -> vector<48x20xf32>
    %22 = vector.shape_cast %21 : vector<48x20xf32> to vector<3x16x20xf32>
    %23 = vector.extract_strided_slice %22 {offsets = [0, 0, 0], sizes = [1, 16, 20], strides = [1, 1, 1]} : vector<3x16x20xf32> to vector<1x16x20xf32>
    %24 = vector.shape_cast %23 : vector<1x16x20xf32> to vector<16x20xf32>
    %cst_20 = arith.constant dense<0.000000e+00> : vector<24x20xf32>
    %25 = tpu.matmul %16, %24, %cst_20 {dimension_numbers = #tpu.dot_dimension_numbers<[1], [0], [0], [1], [0, 0, 1, 1], [], []>} : vector<24x16xf32>, vector<16x20xf32>, vector<24x20xf32> -> vector<24x20xf32>
    %c0_21 = arith.constant 0 : index
    %c1_22 = arith.constant 1 : index
    %c0_23 = arith.constant 0 : index
    %c0_24 = arith.constant 0 : index
    %26 = vector.load %arg5[%c0_21, %c1_22, %c0_23, %c0_24] : memref<1x4x24x20xf32, #tpu.memory_space<vmem>>, vector<1x1x24x20xf32>
    %27 = vector.shape_cast %26 : vector<1x1x24x20xf32> to vector<24x20xf32>
    %28 = vector.shape_cast %25 : vector<24x20xf32> to vector<1x1x24x20xf32>
    tpu.vector_store %arg5[%c0_21, %c1_22, %c0_23, %c0_24], %28 {strides = array<i32>} : memref<1x4x24x20xf32, #tpu.memory_space<vmem>>, vector<1x1x24x20xf32>,
    %29 = vector.extract_strided_slice %22 {offsets = [1, 0, 0], sizes = [1, 16, 20], strides = [1, 1, 1]} : vector<3x16x20xf32> to vector<1x16x20xf32>
    %30 = vector.shape_cast %29 : vector<1x16x20xf32> to vector<16x20xf32>
    %cst_25 = arith.constant dense<0.000000e+00> : vector<24x20xf32>
    %31 = tpu.matmul %16, %30, %cst_25 {dimension_numbers = #tpu.dot_dimension_numbers<[1], [0], [0], [1], [0, 0, 1, 1], [], []>} : vector<24x16xf32>, vector<16x20xf32>, vector<24x20xf32> -> vector<24x20xf32>
    %c0_26 = arith.constant 0 : index
    %c2 = arith.constant 2 : index
    %c0_27 = arith.constant 0 : index
    %c0_28 = arith.constant 0 : index
    %32 = vector.load %arg5[%c0_26, %c2, %c0_27, %c0_28] : memref<1x4x24x20xf32, #tpu.memory_space<vmem>>, vector<1x1x24x20xf32>
    %33 = vector.shape_cast %32 : vector<1x1x24x20xf32> to vector<24x20xf32>
    %34 = vector.shape_cast %31 : vector<24x20xf32> to vector<1x1x24x20xf32>
    tpu.vector_store %arg5[%c0_26, %c2, %c0_27, %c0_28], %34 {strides = array<i32>} : memref<1x4x24x20xf32, #tpu.memory_space<vmem>>, vector<1x1x24x20xf32>,
    %35 = vector.extract_strided_slice %22 {offsets = [2, 0, 0], sizes = [1, 16, 20], strides = [1, 1, 1]} : vector<3x16x20xf32> to vector<1x16x20xf32>
    %36 = vector.shape_cast %35 : vector<1x16x20xf32> to vector<16x20xf32>
    %cst_29 = arith.constant dense<0.000000e+00> : vector<24x20xf32>
    %37 = tpu.matmul %16, %36, %cst_29 {dimension_numbers = #tpu.dot_dimension_numbers<[1], [0], [0], [1], [0, 0, 1, 1], [], []>} : vector<24x16xf32>, vector<16x20xf32>, vector<24x20xf32> -> vector<24x20xf32>
    %c0_30 = arith.constant 0 : index
    %c3 = arith.constant 3 : index
    %c0_31 = arith.constant 0 : index
    %c0_32 = arith.constant 0 : index
    %38 = vector.load %arg5[%c0_30, %c3, %c0_31, %c0_32] : memref<1x4x24x20xf32, #tpu.memory_space<vmem>>, vector<1x1x24x20xf32>
    %39 = vector.shape_cast %38 : vector<1x1x24x20xf32> to vector<24x20xf32>
    %40 = vector.shape_cast %37 : vector<24x20xf32> to vector<1x1x24x20xf32>
    tpu.vector_store %arg5[%c0_30, %c3, %c0_31, %c0_32], %40 {strides = array<i32>} : memref<1x4x24x20xf32, #tpu.memory_space<vmem>>, vector<1x1x24x20xf32>,
    return
  }
  func.func @transform_0(%arg0: i32, %arg1: i32) -> (i32, i32, i32) {
    %c0_i32 = arith.constant 0 : i32
    %c0_i32_0 = arith.constant 0 : i32
    %c0_i32_1 = arith.constant 0 : i32
    return %c0_i32, %arg1, %c0_i32_0 : i32, i32, i32
  }
  func.func @transform_1(%arg0: i32, %arg1: i32) -> (i32, i32, i32) {
    %c0_i32 = arith.constant 0 : i32
    %c0_i32_0 = arith.constant 0 : i32
    %c0_i32_1 = arith.constant 0 : i32
    %c0_i32_2 = arith.constant 0 : i32
    return %c0_i32, %c0_i32_0, %c0_i32_1 : i32, i32, i32
  }
  func.func @transform_2(%arg0: i32, %arg1: i32) -> (i32, i32, i32, i32) {
    %c0_i32 = arith.constant 0 : i32
    %c0_i32_0 = arith.constant 0 : i32
    %c0_i32_1 = arith.constant 0 : i32
    %c0_i32_2 = arith.constant 0 : i32
    return %arg0, %c0_i32, %c0_i32_0, %c0_i32_1 : i32, i32, i32, i32
  }
  func.func @transform_3(%arg0: i32, %arg1: i32) -> (i32, i32, i32, i32) {
    %c0_i32 = arith.constant 0 : i32
    %c0_i32_0 = arith.constant 0 : i32
    %c0_i32_1 = arith.constant 0 : i32
    return %arg0, %c0_i32, %arg1, %c0_i32_0 : i32, i32, i32, i32
  }
}

</mosaic_0001>

<llo_original>
// kernel: resize_forward.1
$region0: #{resize_forward.1}
  #allocation0 [shape = 'u32[]', space=smem, size = 0x4, offset = 0x4, fixed_abs, tag = 'smem constant byte address 0x4 - core index']
  #allocation1 [shape = 'u32[144,128]{1,0:T(1,128)}', space=vmem, size = 0x12000, scoped, tag = 'internal scratch']
  %s0 = inlined_call_operand.hbm [shape: f32[2,24,16], index: 0, kind: input, shape index: {}]
  %s1 = inlined_call_operand.hbm [shape: f32[2,16,20], index: 1, kind: input, shape index: {}]
  %s2 = inlined_call_operand.hbm [shape: f32[2,4,16,16], index: 2, kind: input, shape index: {}]
  %s3 = inlined_call_operand.vmem [shape: f32[2,4,24,20], index: 3, kind: output, shape index: {}]
  %s4 = sld [smem:[#allocation0]]
  $region57: #{resize_forward.1} parent=0
    _
  %s6 = ssub.s32 1, %s4
  %s7 = scalar_select 0, %s6, %s4
  $region1: #{resize_forward.1} parent=0
    #allocation2 [shape = 'u8[24576]{0}', space=vmem, size = 0x6000, scoped, tag = 'input window, operand 0, single buffered']
    #allocation3 [shape = 's32[2]{0}', space=sflag, size = 0x8, scoped, tag = 'scoped memory for resize_forward.1']
    #allocation4 [shape = 'u8[16384]{0}', space=vmem, size = 0x4000, scoped, tag = 'input window, operand 1, single buffered']
    #allocation5 [shape = 's32[1]{0}', space=sflag, size = 0x4, scoped, tag = 'scoped memory for resize_forward.1']
    #allocation6 [shape = 'u8[65536]{0}', space=vmem, size = 0x10000, scoped, tag = 'input window, operand 2']
    %8 = vsyncpa [#allocation3], 0
    %9 = vsyncpa [#allocation5], 0
    loop: start=0, step=1, limit=4
    $region2: #{resize_forward.1} parent=1 // loop_pre_header
      _
    $region3: #{resize_forward.1} parent=1 // loop_header
      %s11 = sphi 0, %s15
      %p12 = scmp.ge.s32.totalorder %s11, 4
      %s18 = sphi 0, %s30
      %s19 = sphi 0, %s26
      %s20 = sphi 0, %s18
      %s21 = sphi 0, %s19
      %s22 = sphi 0, %s20
      %s23 = sphi 0, %s21
      %s33 = sphi 0, %s35
      %s36 = sphi 0, %s33
      %s37 = sphi 0, %s36
      %s53 = sphi 0, %s37
      %s57 = sphi 0, %s57
      %s59 = sphi 0, %s57
      %s60 = sphi 0, %s59
      %s74 = sphi 0, %s60
      %s80 = sphi 0, %s82
      %s83 = sphi 0, %s80
      %s84 = sphi 0, %s83
      %s100 = sphi 0, %s84
      %s108 = sphi 0, %s110
      %s111 = sphi 0, %s108
      %s112 = sphi 0, %s111
      %s128 = sphi 0, %s112
    $region4: #{resize_forward.1} parent=1 // loop_header_branch
      %14 = sbr.rel (%p12) target = $region8
    $region5: #{resize_forward.1} parent=1 // loop_body
      %s16 = ssub.s32 %s11, 1
      %s17 = ssub.s32 %s11, 2
      %s24 = sadd.s32 1, %s19
      %p25 = scmp.ge.s32.totalorder %s24, 1
      %s26 = scalar_select %p25, 0, %s24
      %s27 = sadd.s32 1, %s18
      %s28 = scalar_select %p25, %s27, %s18
      %p29 = scmp.ge.s32.totalorder %s28, 2
      %s30 = scalar_select %p29, 0, %s28
      %s31 = ssub.s32 %s19, %s26
      %p32 = scmp.eq.s32.totalorder %s31, 0
      %s34 = sadd.s32 %s33, 1
      %s35 = scalar_select %p32, %s33, %s34
      %p38 = pneg %p32
      %p39 = scmp.eq.s32.totalorder %s11, 1
      %p40 = por %p38, %p39
      %p41 = scmp.ne.s32.totalorder %s33, %s36
      %p42 = scmp.eq.s32.totalorder %s11, 0
      %p43 = por %p41, %p42
      %p44 = scmp.ne.s32.totalorder %s33, %s36
      %p45 = scmp.eq.s32.totalorder %s16, 1
      %p46 = por %p44, %p45
      %p47 = scmp.ne.s32.totalorder %s36, %s37
      %p48 = scmp.eq.s32.totalorder %s16, 0
      %p49 = por %p47, %p48
      %p50 = scmp.ne.s32.totalorder %s36, %s37
      %p51 = scmp.eq.s32.totalorder %s17, 1
      %p52 = por %p50, %p51
      %p54 = scmp.ne.s32.totalorder %s37, %s53
      %p55 = scmp.eq.s32.totalorder %s17, 0
      %p56 = por %p54, %p55
      %s58 = sadd.s32 %s57, 1
      %p61 = scmp.eq.s32.totalorder %s11, 1
      %p62 = scmp.ne.s32.totalorder %s57, %s59
      %p63 = scmp.eq.s32.totalorder %s11, 0
      %p64 = por %p62, %p63
      %p65 = scmp.ne.s32.totalorder %s57, %s59
      %p66 = scmp.eq.s32.totalorder %s16, 1
      %p67 = por %p65, %p66
      %p68 = scmp.ne.s32.totalorder %s59, %s60
      %p69 = scmp.eq.s32.totalorder %s16, 0
      %p70 = por %p68, %p69
      %p71 = scmp.ne.s32.totalorder %s59, %s60
      %p72 = scmp.eq.s32.totalorder %s17, 1
      %p73 = por %p71, %p72
      %p75 = scmp.ne.s32.totalorder %s60, %s74
      %p76 = scmp.eq.s32.totalorder %s17, 0
      %p77 = por %p75, %p76
      %s78 = ssub.s32 %s18, %s30
      %p79 = scmp.eq.s32.totalorder %s78, 0
      %s81 = sadd.s32 %s80, 1
      %s82 = scalar_select %p79, %s80, %s81
      %p85 = pneg %p79
      %p86 = scmp.eq.s32.totalorder %s11, 1
      %p87 = por %p85, %p86
      %p88 = scmp.ne.s32.totalorder %s80, %s83
      %p89 = scmp.eq.s32.totalorder %s11, 0
      %p90 = por %p88, %p89
      %p91 = scmp.ne.s32.totalorder %s80, %s83
      %p92 = scmp.eq.s32.totalorder %s16, 1
      %p93 = por %p91, %p92
      %p94 = scmp.ne.s32.totalorder %s83, %s84
      %p95 = scmp.eq.s32.totalorder %s16, 0
      %p96 = por %p94, %p95
      %p97 = scmp.ne.s32.totalorder %s83, %s84
      %p98 = scmp.eq.s32.totalorder %s17, 1
      %p99 = por %p97, %p98
      %p101 = scmp.ne.s32.totalorder %s84, %s100
      %p102 = scmp.eq.s32.totalorder %s17, 0
      %p103 = por %p101, %p102
      %s104 = ssub.s32 %s18, %s30
      %s105 = ssub.s32 %s19, %s26
      %s106 = sor.u32 %s104, %s105
      %p107 = scmp.eq.s32.totalorder %s106, 0
      %s109 = sadd.s32 %s108, 1
      %s110 = scalar_select %p107, %s108, %s109
      %p113 = pneg %p107
      %p114 = scmp.eq.s32.totalorder %s11, 1
      %p115 = por %p113, %p114
      %p116 = scmp.ne.s32.totalorder %s108, %s111
      %p117 = scmp.eq.s32.totalorder %s11, 0
      %p118 = por %p116, %p117
      %p119 = scmp.ne.s32.totalorder %s108, %s111
      %p120 = scmp.eq.s32.totalorder %s16, 1
      %p121 = por %p119, %p120
      %p122 = scmp.ne.s32.totalorder %s111, %s112
      %p123 = scmp.eq.s32.totalorder %s16, 0
      %p124 = por %p122, %p123
      %p125 = scmp.ne.s32.totalorder %s111, %s112
      %p126 = scmp.eq.s32.totalorder %s17, 1
      %p127 = por %p125, %p126
      %p129 = scmp.ne.s32.totalorder %s112, %s128
      %p130 = scmp.eq.s32.totalorder %s17, 0
      %p131 = por %p129, %p130
      %p132 = scmp.le.s32.totalorder 1, %s11
      %p133 = scmp.lt.s32.totalorder %s11, 3
      %p134 = pnand %p132, %p133
      %p135 = pneg %p134
      // Predicated region
      $region9: #{resize_forward.1} parent=5 // pred_check
        _
      $region10: #{resize_forward.1} parent=5 // pred_check_branch
        %137 = sbr.rel (%p134) target = $region12
      $region11: #{resize_forward.1} parent=5 // pred_region
        %s138 = ssub.s32 %s11, 1
        // Predicated region
        $region13: #{resize_forward.1} parent=11 // pred_check
          %p139 = pneg %p49
        $region14: #{resize_forward.1} parent=11 // pred_check_branch
          %141 = sbr.rel (%p139) target = $region16
        $region15: #{resize_forward.1} parent=11 // pred_region
          %s142 = smul.u32 3, %s21
          %s144 = ssub.s32 768, 768
          %145 = vsyncadd [#allocation3], %s144
          %s146 = smul.addr %s142, 128
          %s147 = scalar_lea.hbm %s0, %s146
          %s148 = sshll.u32 [#allocation2], 4
          %s149 = int_to_ptr.vmem [resolvable:$true] %s148
          %154 = dma.hbm_to_vmem [thread:$0]  %s147, 768, %s149, [#allocation3], 128, 128, 8
        $region16: #{resize_forward.1} parent=11 // pred_fallthru
          _
        // Predicated region
        $region17: #{resize_forward.1} parent=11 // pred_check
          %p155 = pneg %p70
        $region18: #{resize_forward.1} parent=11 // pred_check_branch
          %157 = sbr.rel (%p155) target = $region20
        $region19: #{resize_forward.1} parent=11 // pred_region
          %s159 = ssub.s32 512, 512
          %160 = vsyncadd [#allocation5], %s159
          %s161 = sshll.u32 [#allocation4], 4
          %s162 = int_to_ptr.vmem [resolvable:$true] %s161
          %167 = dma.hbm_to_vmem [thread:$0]  %s1, 512, %s162, [#allocation5], 128, 128, 8
        $region20: #{resize_forward.1} parent=11 // pred_fallthru
          _
      $region12: #{resize_forward.1} parent=5 // pred_fallthru
        _
      %p168 = scmp.lt.s32.totalorder %s11, 2
      // Predicated region
      $region21: #{resize_forward.1} parent=5 // pred_check
        %p169 = pneg %p168
      $region22: #{resize_forward.1} parent=5 // pred_check_branch
        %171 = sbr.rel (%p169) target = $region24
      $region23: #{resize_forward.1} parent=5 // pred_region
        // Predicated region
        $region25: #{resize_forward.1} parent=23 // pred_check
          %p172 = pneg %p90
        $region26: #{resize_forward.1} parent=23 // pred_check_branch
          %174 = sbr.rel (%p172) target = $region28
        $region27: #{resize_forward.1} parent=23 // pred_region
          %s175 = sand.u32 %s11, 1
          %s176 = scalar_lea.sflag [#allocation3], %s175
          %s177 = sand.u32 %s80, 1
          %s178 = smul.addr %s177, 64
          %s179 = scalar_lea.vmem [#allocation6], %s178
          %s181 = ssub.s32 1024, 1024
          %182 = vsyncadd %s176, %s181
          %s183 = smul.addr %s18, 8
          %s184 = smul.addr %s183, 128
          %s185 = scalar_lea.hbm %s2, %s184
          %s186 = sshll.u32 %s179, 4
          %s187 = int_to_ptr.vmem [resolvable:$true] %s186
          %192 = dma.hbm_to_vmem [thread:$0]  %s185, 1024, %s187, %s176, 128, 128, 8
        $region28: #{resize_forward.1} parent=23 // pred_fallthru
          _
      $region24: #{resize_forward.1} parent=5 // pred_fallthru
        _
      %p193 = scmp.le.s32.totalorder 1, %s11
      %p194 = scmp.lt.s32.totalorder %s11, 3
      %p195 = pnand %p193, %p194
      %p196 = pneg %p195
      // Predicated region
      $region29: #{resize_forward.1} parent=5 // pred_check
        _
      $region30: #{resize_forward.1} parent=5 // pred_check_branch
        %198 = sbr.rel (%p195) target = $region32
      $region31: #{resize_forward.1} parent=5 // pred_region
        %s199 = ssub.s32 %s11, 1
        // Predicated region
        $region33: #{resize_forward.1} parent=31 // pred_check
          %p200 = pneg %p49
        $region34: #{resize_forward.1} parent=31 // pred_check_branch
          %202 = sbr.rel (%p200) target = $region36
        $region35: #{resize_forward.1} parent=31 // pred_region
          %203 = dma.done [#allocation3], 768
        $region36: #{resize_forward.1} parent=31 // pred_fallthru
          _
        // Predicated region
        $region37: #{resize_forward.1} parent=31 // pred_check
          %p204 = pneg %p70
        $region38: #{resize_forward.1} parent=31 // pred_check_branch
          %206 = sbr.rel (%p204) target = $region40
        $region39: #{resize_forward.1} parent=31 // pred_region
          %207 = dma.done [#allocation5], 512
        $region40: #{resize_forward.1} parent=31 // pred_fallthru
          _
        %s208 = sand.u32 %s16, 1
        %s209 = scalar_lea.sflag [#allocation3], %s208
        %s210 = sand.u32 %s83, 1
        %s211 = smul.addr %s210, 64
        %s212 = scalar_lea.vmem [#allocation6], %s211
        // Predicated region
        $region41: #{resize_forward.1} parent=31 // pred_check
          %p213 = pneg %p96
        $region42: #{resize_forward.1} parent=31 // pred_check_branch
          %215 = sbr.rel (%p213) target = $region44
        $region43: #{resize_forward.1} parent=31 // pred_region
          %216 = dma.done %s209, 1024
        $region44: #{resize_forward.1} parent=31 // pred_fallthru
          _
        %p217 = pneg %p49
        %p218 = pneg %p46
        %p219 = pneg %p70
        %p220 = pneg %p67
        %s221 = sand.u32 %s16, 1
        %s222 = scalar_lea.sflag [#allocation3], %s221
        %s223 = sand.u32 %s83, 1
        %s224 = smul.addr %s223, 64
        %s225 = scalar_lea.vmem [#allocation6], %s224
        %p226 = pneg %p96
        %p227 = pneg %p93
        %p228 = pneg %p124
        %p229 = pneg %p121
        %s230 = smul.u32 3, %s21
        %p231 = scmp.lt.s32.totalorder %s20, 1
        %s232 = scalar_select %p231, %s20, 1
        %p233 = scmp.lt.s32.totalorder %s230, 2
        %s234 = scalar_select %p233, %s230, 2
        %s235 = smul.addr %s232, 12
        %s236 = sadd.s32 %s234, %s235
        %s237 = smul.addr %s236, 8
        %s238 = scalar_lea.vmem %s3, %s237
        %s239 = smul.u32 3, %s21
        %s240 = smul.u32 3, %s21
        %p241 = scmp.lt.s32.totalorder %s20, 1
        %s242 = scalar_select %p241, %s20, 1
        %p243 = scmp.lt.s32.totalorder %s240, 2
        %s244 = scalar_select %p243, %s240, 2
        %s245 = smul.addr %s242, 12
        %s246 = sadd.s32 %s244, %s245
        %s247 = smul.addr %s246, 8
        %s248 = scalar_lea.vmem %s3, %s247
        %s249 = smul.u32 3, %s21
        %v250 = vld [vmem:[%s212] sm:$0xff]
        %v251 = vld [vmem:[%s212 + $0x8] sm:$0xff]
        %v252 = vld [vmem:[%s212 + $0x10] sm:$0xff]
        %v253 = vld [vmem:[%s212 + $0x18] sm:$0xff]
        %v254 = vld [vmem:[%s212 + $0x20] sm:$0xff]
        %v255 = vld [vmem:[%s212 + $0x28] sm:$0xff]
        %v256 = vld [vmem:[%s212 + $0x30] sm:$0xff]
        %v257 = vld [vmem:[%s212 + $0x38] sm:$0xff]
        %v258 = vld [vmem:[#allocation2] sm:$0xff]
        %v259 = vld [vmem:[#allocation2 + $0x8] sm:$0xff]
        %v260 = vld [vmem:[#allocation2 + $0x10] sm:$0xff]
        %v261 = vld [vmem:[#allocation4] sm:$0xff]
        %v262 = vld [vmem:[#allocation4 + $0x8] sm:$0xff]
        %vm263 = vcmask 130048
        %v265 = vsel %vm263, %v250, 0
        %v268 = vsel %vm263, %v251, 0
        %270 = vmatprep.subr.mxu0 0.0
        %271 = vmatpush1.msra.mxu0 %v261
        %272 = vmatprep.subr.mxu0 0.0
        %273 = vmatpush1.msra.mxu0 %v262
        %274 = vmatprep.subr.mxu0 0.0
        %275 = vmatpush1.msra.mxu0 0.0
        %276 = vmatprep.subr.mxu0 0.0
        %277 = vmatpush1.msra.mxu0 0.0
        %278 = vmatprep.subr.mxu0 0.0
        %279 = vmatpush1.msra.mxu0 0.0
        %280 = vmatprep.subr.mxu0 0.0
        %281 = vmatpush1.msra.mxu0 0.0
        %282 = vmatprep.subr.mxu0 0.0
        %283 = vmatpush1.msra.mxu0 0.0
        %284 = vmatprep.subr.mxu0 0.0
        %285 = vmatpush1.msra.mxu0 0.0
        %286 = vmatprep.subr.mxu0 0.0
        %287 = vmatpush1.msra.mxu0 0.0
        %288 = vmatprep.subr.mxu0 0.0
        %289 = vmatpush1.msra.mxu0 0.0
        %290 = vmatprep.subr.mxu0 0.0
        %291 = vmatpush1.msra.mxu0 0.0
        %292 = vmatprep.subr.mxu0 0.0
        %293 = vmatpush1.msra.mxu0 0.0
        %294 = vmatprep.subr.mxu0 0.0
        %295 = vmatpush1.msra.mxu0 0.0
        %296 = vmatprep.subr.mxu0 0.0
        %297 = vmatpush1.msra.mxu0 0.0
        %298 = vmatprep.subr.mxu0 0.0
        %299 = vmatpush1.msra.mxu0 0.0
        %300 = vmatprep.subr.mxu0 0.0
        %301 = vmatpush1.msra.mxu0 0.0
        %302 = vmatprep.subr.mxu0 0.0
        %303 = vmatpush1.msra.mxu0 0.0
        %304 = vmatprep.subr.mxu0 0.0
        %305 = vmatpush1.msra.mxu0 0.0
        %306 = vmatprep.subr.mxu0 0.0
        %307 = vmatpush1.msra.mxu0 0.0
        %308 = vmatprep.subr.mxu0 0.0
        %309 = vmatpush1.msra.mxu0 0.0
        %310 = vmatprep.subr.mxu0 0.0
        %311 = vmatpush1.msra.mxu0 0.0
        %312 = vmatprep.subr.mxu0 0.0
        %313 = vmatpush1.msra.mxu0 0.0
        %314 = vmatprep.subr.mxu0 0.0
        %315 = vmatpush1.msra.mxu0 0.0
        %316 = vmatprep.subr.mxu0 0.0
        %317 = vmatpush1.msra.mxu0 0.0
        %318 = vmatprep.subr.mxu0 0.0
        %319 = vmatpush1.msra.mxu0 0.0
        %320 = vmatprep.subr.mxu0 0.0
        %321 = vmatpush1.msra.mxu0 0.0
        %322 = vmatprep.subr.mxu0 0.0
        %323 = vmatpush1.msra.mxu0 0.0
        %324 = vmatprep.subr.mxu0 0.0
        %325 = vmatpush1.msra.mxu0 0.0
        %326 = vmatprep.subr.mxu0 0.0
        %327 = vmatpush1.msra.mxu0 0.0
        %328 = vmatprep.subr.mxu0 0.0
        %329 = vmatpush1.msra.mxu0 0.0
        %330 = vmatprep.subr.mxu0 0.0
        %331 = vmatpush1.msra.mxu0 0.0
        %332 = vmatprep.subr.mxu0 0.0
        %333 = vmatpush1.msra.mxu0 0.0
        %334 = vmatprep.mubr.f32.mxu0 0.0
        %335 = vmatmul.mubr.f32.gmra.mrb[0].mxu0 %v265
        %v336 = vpop.f32.mrb[0].mxu0
        %v337 = vadd.f32 0.0, %v336
        %v338 = vpop.f32.mrb[0].mxu0
        %339 = vmatprep.mubr.f32.mxu0 0.0
        %340 = vmatmul.mubr.f32.gmra.mrb[0].mxu0 %v268
        %v341 = vpop.f32.mrb[0].mxu0
        %v342 = vadd.f32 0.0, %v341
        %v343 = vpop.f32.mrb[0].mxu0
        %344 = vdwg.mxu0
        %v346 = vsel %vm263, %v258, 0
        %v349 = vsel %vm263, %v259, 0
        %v352 = vsel %vm263, %v260, 0
        %354 = vmatprep.subr.mxu0 0.0
        %355 = vmatpush1.msra.mxu0 %v337
        %356 = vmatprep.subr.mxu0 0.0
        %357 = vmatpush1.msra.mxu0 %v342
        %358 = vmatprep.subr.mxu0 0.0
        %359 = vmatpush1.msra.mxu0 0.0
        %360 = vmatprep.subr.mxu0 0.0
        %361 = vmatpush1.msra.mxu0 0.0
        %362 = vmatprep.subr.mxu0 0.0
        %363 = vmatpush1.msra.mxu0 0.0
        %364 = vmatprep.subr.mxu0 0.0
        %365 = vmatpush1.msra.mxu0 0.0
        %366 = vmatprep.subr.mxu0 0.0
        %367 = vmatpush1.msra.mxu0 0.0
        %368 = vmatprep.subr.mxu0 0.0
        %369 = vmatpush1.msra.mxu0 0.0
        %370 = vmatprep.subr.mxu0 0.0
        %371 = vmatpush1.msra.mxu0 0.0
        %372 = vmatprep.subr.mxu0 0.0
        %373 = vmatpush1.msra.mxu0 0.0
        %374 = vmatprep.subr.mxu0 0.0
        %375 = vmatpush1.msra.mxu0 0.0
        %376 = vmatprep.subr.mxu0 0.0
        %377 = vmatpush1.msra.mxu0 0.0
        %378 = vmatprep.subr.mxu0 0.0
        %379 = vmatpush1.msra.mxu0 0.0
        %380 = vmatprep.subr.mxu0 0.0
        %381 = vmatpush1.msra.mxu0 0.0
        %382 = vmatprep.subr.mxu0 0.0
        %383 = vmatpush1.msra.mxu0 0.0
        %384 = vmatprep.subr.mxu0 0.0
        %385 = vmatpush1.msra.mxu0 0.0
        %386 = vmatprep.subr.mxu0 0.0
        %387 = vmatpush1.msra.mxu0 0.0
        %388 = vmatprep.subr.mxu0 0.0
        %389 = vmatpush1.msra.mxu0 0.0
        %390 = vmatprep.subr.mxu0 0.0
        %391 = vmatpush1.msra.mxu0 0.0
        %392 = vmatprep.subr.mxu0 0.0
        %393 = vmatpush1.msra.mxu0 0.0
        %394 = vmatprep.subr.mxu0 0.0
        %395 = vmatpush1.msra.mxu0 0.0
        %396 = vmatprep.subr.mxu0 0.0
        %397 = vmatpush1.msra.mxu0 0.0
        %398 = vmatprep.subr.mxu0 0.0
        %399 = vmatpush1.msra.mxu0 0.0
        %400 = vmatprep.subr.mxu0 0.0
        %401 = vmatpush1.msra.mxu0 0.0
        %402 = vmatprep.subr.mxu0 0.0
        %403 = vmatpush1.msra.mxu0 0.0
        %404 = vmatprep.subr.mxu0 0.0
        %405 = vmatpush1.msra.mxu0 0.0
        %406 = vmatprep.subr.mxu0 0.0
        %407 = vmatpush1.msra.mxu0 0.0
        %408 = vmatprep.subr.mxu0 0.0
        %409 = vmatpush1.msra.mxu0 0.0
        %410 = vmatprep.subr.mxu0 0.0
        %411 = vmatpush1.msra.mxu0 0.0
        %412 = vmatprep.subr.mxu0 0.0
        %413 = vmatpush1.msra.mxu0 0.0
        %414 = vmatprep.subr.mxu0 0.0
        %415 = vmatpush1.msra.mxu0 0.0
        %416 = vmatprep.subr.mxu0 0.0
        %417 = vmatpush1.msra.mxu0 0.0
        %418 = vmatprep.mubr.f32.mxu0 0.0
        %419 = vmatmul.mubr.f32.gmra.mrb[0].mxu0 %v346
        %v420 = vpop.f32.mrb[0].mxu0
        %v421 = vadd.f32 0.0, %v420
        %v422 = vpop.f32.mrb[0].mxu0
        %423 = vmatprep.mubr.f32.mxu0 0.0
        %424 = vmatmul.mubr.f32.gmra.mrb[0].mxu0 %v349
        %v425 = vpop.f32.mrb[0].mxu0
        %v426 = vadd.f32 0.0, %v425
        %v427 = vpop.f32.mrb[0].mxu0
        %428 = vmatprep.mubr.f32.mxu0 0.0
        %429 = vmatmul.mubr.f32.gmra.mrb[0].mxu0 %v352
        %v430 = vpop.f32.mrb[0].mxu0
        %v431 = vadd.f32 0.0, %v430
        %v432 = vpop.f32.mrb[0].mxu0
        %433 = vdwg.mxu0
        %vm434 = vcmask 162816
        %435 = vst.msk [vmem:[%s248] sm:$0xff] %vm434, %v421
        %436 = vst.msk [vmem:[%s248 + $0x8] sm:$0xff] %vm434, %v426
        %437 = vst.msk [vmem:[%s248 + $0x10] sm:$0xff] %vm434, %v431
        %s438 = scalar_lea.vmem [#allocation2], 24
        %v439 = vld [vmem:[%s438] sm:$0xff]
        %v440 = vld [vmem:[%s438 + $0x8] sm:$0xff]
        %v441 = vld [vmem:[%s438 + $0x10] sm:$0xff]
        %s442 = scalar_lea.vmem [#allocation4], 16
        %v443 = vld [vmem:[%s442] sm:$0xff]
        %v444 = vld [vmem:[%s442 + $0x8] sm:$0xff]
        %v446 = vsel %vm263, %v252, 0
        %v449 = vsel %vm263, %v253, 0
        %v452 = vsel %vm263, %v254, 0
        %v455 = vsel %vm263, %v255, 0
        %v458 = vsel %vm263, %v256, 0
        %v461 = vsel %vm263, %v257, 0
        %463 = vmatprep.subr.mxu0 0.0
        %464 = vmatpush1.msra.mxu0 %v443
        %465 = vmatprep.subr.mxu0 0.0
        %466 = vmatpush1.msra.mxu0 %v444
        %467 = vmatprep.subr.mxu0 0.0
        %468 = vmatpush1.msra.mxu0 0.0
        %469 = vmatprep.subr.mxu0 0.0
        %470 = vmatpush1.msra.mxu0 0.0
        %471 = vmatprep.subr.mxu0 0.0
        %472 = vmatpush1.msra.mxu0 0.0
        %473 = vmatprep.subr.mxu0 0.0
        %474 = vmatpush1.msra.mxu0 0.0
        %475 = vmatprep.subr.mxu0 0.0
        %476 = vmatpush1.msra.mxu0 0.0
        %477 = vmatprep.subr.mxu0 0.0
        %478 = vmatpush1.msra.mxu0 0.0
        %479 = vmatprep.subr.mxu0 0.0
        %480 = vmatpush1.msra.mxu0 0.0
        %481 = vmatprep.subr.mxu0 0.0
        %482 = vmatpush1.msra.mxu0 0.0
        %483 = vmatprep.subr.mxu0 0.0
        %484 = vmatpush1.msra.mxu0 0.0
        %485 = vmatprep.subr.mxu0 0.0
        %486 = vmatpush1.msra.mxu0 0.0
        %487 = vmatprep.subr.mxu0 0.0
        %488 = vmatpush1.msra.mxu0 0.0
        %489 = vmatprep.subr.mxu0 0.0
        %490 = vmatpush1.msra.mxu0 0.0
        %491 = vmatprep.subr.mxu0 0.0
        %492 = vmatpush1.msra.mxu0 0.0
        %493 = vmatprep.subr.mxu0 0.0
        %494 = vmatpush1.msra.mxu0 0.0
        %495 = vmatprep.subr.mxu0 0.0
        %496 = vmatpush1.msra.mxu0 0.0
        %497 = vmatprep.subr.mxu0 0.0
        %498 = vmatpush1.msra.mxu0 0.0
        %499 = vmatprep.subr.mxu0 0.0
        %500 = vmatpush1.msra.mxu0 0.0
        %501 = vmatprep.subr.mxu0 0.0
        %502 = vmatpush1.msra.mxu0 0.0
        %503 = vmatprep.subr.mxu0 0.0
        %504 = vmatpush1.msra.mxu0 0.0
        %505 = vmatprep.subr.mxu0 0.0
        %506 = vmatpush1.msra.mxu0 0.0
        %507 = vmatprep.subr.mxu0 0.0
        %508 = vmatpush1.msra.mxu0 0.0
        %509 = vmatprep.subr.mxu0 0.0
        %510 = vmatpush1.msra.mxu0 0.0
        %511 = vmatprep.subr.mxu0 0.0
        %512 = vmatpush1.msra.mxu0 0.0
        %513 = vmatprep.subr.mxu0 0.0
        %514 = vmatpush1.msra.mxu0 0.0
        %515 = vmatprep.subr.mxu0 0.0
        %516 = vmatpush1.msra.mxu0 0.0
        %517 = vmatprep.subr.mxu0 0.0
        %518 = vmatpush1.msra.mxu0 0.0
        %519 = vmatprep.subr.mxu0 0.0
        %520 = vmatpush1.msra.mxu0 0.0
        %521 = vmatprep.subr.mxu0 0.0
        %522 = vmatpush1.msra.mxu0 0.0
        %523 = vmatprep.subr.mxu0 0.0
        %524 = vmatpush1.msra.mxu0 0.0
        %525 = vmatprep.subr.mxu0 0.0
        %526 = vmatpush1.msra.mxu0 0.0
        %527 = vmatprep.mubr.f32.mxu0 0.0
        %528 = vmatmul.mubr.f32.gmra.mrb[0].mxu0 %v446
        %v529 = vpop.f32.mrb[0].mxu0
        %v530 = vadd.f32 0.0, %v529
        %v531 = vpop.f32.mrb[0].mxu0
        %532 = vmatprep.mubr.f32.mxu0 0.0
        %533 = vmatmul.mubr.f32.gmra.mrb[0].mxu0 %v449
        %v534 = vpop.f32.mrb[0].mxu0
        %v535 = vadd.f32 0.0, %v534
        %v536 = vpop.f32.mrb[0].mxu0
        %537 = vmatprep.mubr.f32.mxu0 0.0
        %538 = vmatmul.mubr.f32.gmra.mrb[0].mxu0 %v452
        %v539 = vpop.f32.mrb[0].mxu0
        %v540 = vadd.f32 0.0, %v539
        %v541 = vpop.f32.mrb[0].mxu0
        %542 = vmatprep.mubr.f32.mxu0 0.0
        %543 = vmatmul.mubr.f32.gmra.mrb[0].mxu0 %v455
        %v544 = vpop.f32.mrb[0].mxu0
        %v545 = vadd.f32 0.0, %v544
        %v546 = vpop.f32.mrb[0].mxu0
        %547 = vmatprep.mubr.f32.mxu0 0.0
        %548 = vmatmul.mubr.f32.gmra.mrb[0].mxu0 %v458
        %v549 = vpop.f32.mrb[0].mxu0
        %v550 = vadd.f32 0.0, %v549
        %v551 = vpop.f32.mrb[0].mxu0
        %552 = vmatprep.mubr.f32.mxu0 0.0
        %553 = vmatmul.mubr.f32.gmra.mrb[0].mxu0 %v461
        %v554 = vpop.f32.mrb[0].mxu0
        %v555 = vadd.f32 0.0, %v554
        %v556 = vpop.f32.mrb[0].mxu0
        %557 = vdwg.mxu0
        %v559 = vsel %vm263, %v439, 0
        %v562 = vsel %vm263, %v440, 0
        %v565 = vsel %vm263, %v441, 0
        %567 = vmatprep.subr.mxu0 0.0
        %568 = vmatpush1.msra.mxu0 %v530
        %569 = vmatprep.subr.mxu0 0.0
        %570 = vmatpush1.msra.mxu0 %v535
        %571 = vmatprep.subr.mxu0 0.0
        %572 = vmatpush1.msra.mxu0 0.0
        %573 = vmatprep.subr.mxu0 0.0
        %574 = vmatpush1.msra.mxu0 0.0
        %575 = vmatprep.subr.mxu0 0.0
        %576 = vmatpush1.msra.mxu0 0.0
        %577 = vmatprep.subr.mxu0 0.0
        %578 = vmatpush1.msra.mxu0 0.0
        %579 = vmatprep.subr.mxu0 0.0
        %580 = vmatpush1.msra.mxu0 0.0
        %581 = vmatprep.subr.mxu0 0.0
        %582 = vmatpush1.msra.mxu0 0.0
        %583 = vmatprep.subr.mxu0 0.0
        %584 = vmatpush1.msra.mxu0 0.0
        %585 = vmatprep.subr.mxu0 0.0
        %586 = vmatpush1.msra.mxu0 0.0
        %587 = vmatprep.subr.mxu0 0.0
        %588 = vmatpush1.msra.mxu0 0.0
        %589 = vmatprep.subr.mxu0 0.0
        %590 = vmatpush1.msra.mxu0 0.0
        %591 = vmatprep.subr.mxu0 0.0
        %592 = vmatpush1.msra.mxu0 0.0
        %593 = vmatprep.subr.mxu0 0.0
        %594 = vmatpush1.msra.mxu0 0.0
        %595 = vmatprep.subr.mxu0 0.0
        %596 = vmatpush1.msra.mxu0 0.0
        %597 = vmatprep.subr.mxu0 0.0
        %598 = vmatpush1.msra.mxu0 0.0
        %599 = vmatprep.subr.mxu0 0.0
        %600 = vmatpush1.msra.mxu0 0.0
        %601 = vmatprep.subr.mxu0 0.0
        %602 = vmatpush1.msra.mxu0 0.0
        %603 = vmatprep.subr.mxu0 0.0
        %604 = vmatpush1.msra.mxu0 0.0
        %605 = vmatprep.subr.mxu0 0.0
        %606 = vmatpush1.msra.mxu0 0.0
        %607 = vmatprep.subr.mxu0 0.0
        %608 = vmatpush1.msra.mxu0 0.0
        %609 = vmatprep.subr.mxu0 0.0
        %610 = vmatpush1.msra.mxu0 0.0
        %611 = vmatprep.subr.mxu0 0.0
        %612 = vmatpush1.msra.mxu0 0.0
        %613 = vmatprep.subr.mxu0 0.0
        %614 = vmatpush1.msra.mxu0 0.0
        %615 = vmatprep.subr.mxu0 0.0
        %616 = vmatpush1.msra.mxu0 0.0
        %617 = vmatprep.subr.mxu0 0.0
        %618 = vmatpush1.msra.mxu0 0.0
        %619 = vmatprep.subr.mxu0 0.0
        %620 = vmatpush1.msra.mxu0 0.0
        %621 = vmatprep.subr.mxu0 0.0
        %622 = vmatpush1.msra.mxu0 0.0
        %623 = vmatprep.subr.mxu0 0.0
        %624 = vmatpush1.msra.mxu0 0.0
        %625 = vmatprep.subr.mxu0 0.0
        %626 = vmatpush1.msra.mxu0 0.0
        %627 = vmatprep.subr.mxu0 0.0
        %628 = vmatpush1.msra.mxu0 0.0
        %629 = vmatprep.subr.mxu0 0.0
        %630 = vmatpush1.msra.mxu0 0.0
        %631 = vmatprep.mubr.f32.mxu0 0.0
        %632 = vmatmul.mubr.f32.gmra.mrb[0].mxu0 %v559
        %v633 = vpop.f32.mrb[0].mxu0
        %v634 = vadd.f32 0.0, %v633
        %v635 = vpop.f32.mrb[0].mxu0
        %636 = vmatprep.mubr.f32.mxu0 0.0
        %637 = vmatmul.mubr.f32.gmra.mrb[0].mxu0 %v562
        %v638 = vpop.f32.mrb[0].mxu0
        %v639 = vadd.f32 0.0, %v638
        %v640 = vpop.f32.mrb[0].mxu0
        %641 = vmatprep.mubr.f32.mxu0 0.0
        %642 = vmatmul.mubr.f32.gmra.mrb[0].mxu0 %v565
        %v643 = vpop.f32.mrb[0].mxu0
        %v644 = vadd.f32 0.0, %v643
        %v645 = vpop.f32.mrb[0].mxu0
        %646 = vdwg.mxu0
        %s647 = scalar_lea.vmem %s248, 24
        %648 = vst.msk [vmem:[%s647] sm:$0xff] %vm434, %v634
        %649 = vst.msk [vmem:[%s647 + $0x8] sm:$0xff] %vm434, %v639
        %650 = vst.msk [vmem:[%s647 + $0x10] sm:$0xff] %vm434, %v644
        %651 = vmatprep.subr.mxu0 0.0
        %652 = vmatpush1.msra.mxu0 %v540
        %653 = vmatprep.subr.mxu0 0.0
        %654 = vmatpush1.msra.mxu0 %v545
        %655 = vmatprep.subr.mxu0 0.0
        %656 = vmatpush1.msra.mxu0 0.0
        %657 = vmatprep.subr.mxu0 0.0
        %658 = vmatpush1.msra.mxu0 0.0
        %659 = vmatprep.subr.mxu0 0.0
        %660 = vmatpush1.msra.mxu0 0.0
        %661 = vmatprep.subr.mxu0 0.0
        %662 = vmatpush1.msra.mxu0 0.0
        %663 = vmatprep.subr.mxu0 0.0
        %664 = vmatpush1.msra.mxu0 0.0
        %665 = vmatprep.subr.mxu0 0.0
        %666 = vmatpush1.msra.mxu0 0.0
        %667 = vmatprep.subr.mxu0 0.0
        %668 = vmatpush1.msra.mxu0 0.0
        %669 = vmatprep.subr.mxu0 0.0
        %670 = vmatpush1.msra.mxu0 0.0
        %671 = vmatprep.subr.mxu0 0.0
        %672 = vmatpush1.msra.mxu0 0.0
        %673 = vmatprep.subr.mxu0 0.0
        %674 = vmatpush1.msra.mxu0 0.0
        %675 = vmatprep.subr.mxu0 0.0
        %676 = vmatpush1.msra.mxu0 0.0
        %677 = vmatprep.subr.mxu0 0.0
        %678 = vmatpush1.msra.mxu0 0.0
        %679 = vmatprep.subr.mxu0 0.0
        %680 = vmatpush1.msra.mxu0 0.0
        %681 = vmatprep.subr.mxu0 0.0
        %682 = vmatpush1.msra.mxu0 0.0
        %683 = vmatprep.subr.mxu0 0.0
        %684 = vmatpush1.msra.mxu0 0.0
        %685 = vmatprep.subr.mxu0 0.0
        %686 = vmatpush1.msra.mxu0 0.0
        %687 = vmatprep.subr.mxu0 0.0
        %688 = vmatpush1.msra.mxu0 0.0
        %689 = vmatprep.subr.mxu0 0.0
        %690 = vmatpush1.msra.mxu0 0.0
        %691 = vmatprep.subr.mxu0 0.0
        %692 = vmatpush1.msra.mxu0 0.0
        %693 = vmatprep.subr.mxu0 0.0
        %694 = vmatpush1.msra.mxu0 0.0
        %695 = vmatprep.subr.mxu0 0.0
        %696 = vmatpush1.msra.mxu0 0.0
        %697 = vmatprep.subr.mxu0 0.0
        %698 = vmatpush1.msra.mxu0 0.0
        %699 = vmatprep.subr.mxu0 0.0
        %700 = vmatpush1.msra.mxu0 0.0
        %701 = vmatprep.subr.mxu0 0.0
        %702 = vmatpush1.msra.mxu0 0.0
        %703 = vmatprep.subr.mxu0 0.0
        %704 = vmatpush1.msra.mxu0 0.0
        %705 = vmatprep.subr.mxu0 0.0
        %706 = vmatpush1.msra.mxu0 0.0
        %707 = vmatprep.subr.mxu0 0.0
        %708 = vmatpush1.msra.mxu0 0.0
        %709 = vmatprep.subr.mxu0 0.0
        %710 = vmatpush1.msra.mxu0 0.0
        %711 = vmatprep.subr.mxu0 0.0
        %712 = vmatpush1.msra.mxu0 0.0
        %713 = vmatprep.subr.mxu0 0.0
        %714 = vmatpush1.msra.mxu0 0.0
        %715 = vmatprep.mubr.f32.mxu0 0.0
        %716 = vmatmul.mubr.f32.gmra.mrb[0].mxu0 %v559
        %v717 = vpop.f32.mrb[0].mxu0
        %v718 = vadd.f32 0.0, %v717
        %v719 = vpop.f32.mrb[0].mxu0
        %720 = vmatprep.mubr.f32.mxu0 0.0
        %721 = vmatmul.mubr.f32.gmra.mrb[0].mxu0 %v562
        %v722 = vpop.f32.mrb[0].mxu0
        %v723 = vadd.f32 0.0, %v722
        %v724 = vpop.f32.mrb[0].mxu0
        %725 = vmatprep.mubr.f32.mxu0 0.0
        %726 = vmatmul.mubr.f32.gmra.mrb[0].mxu0 %v565
        %v727 = vpop.f32.mrb[0].mxu0
        %v728 = vadd.f32 0.0, %v727
        %v729 = vpop.f32.mrb[0].mxu0
        %730 = vdwg.mxu0
        %s731 = scalar_lea.vmem %s248, 48
        %732 = vst.msk [vmem:[%s731] sm:$0xff] %vm434, %v718
        %733 = vst.msk [vmem:[%s731 + $0x8] sm:$0xff] %vm434, %v723
        %734 = vst.msk [vmem:[%s731 + $0x10] sm:$0xff] %vm434, %v728
        %735 = vmatprep.subr.mxu0 0.0
        %736 = vmatpush1.msra.mxu0 %v550
        %737 = vmatprep.subr.mxu0 0.0
        %738 = vmatpush1.msra.mxu0 %v555
        %739 = vmatprep.subr.mxu0 0.0
        %740 = vmatpush1.msra.mxu0 0.0
        %741 = vmatprep.subr.mxu0 0.0
        %742 = vmatpush1.msra.mxu0 0.0
        %743 = vmatprep.subr.mxu0 0.0
        %744 = vmatpush1.msra.mxu0 0.0
        %745 = vmatprep.subr.mxu0 0.0
        %746 = vmatpush1.msra.mxu0 0.0
        %747 = vmatprep.subr.mxu0 0.0
        %748 = vmatpush1.msra.mxu0 0.0
        %749 = vmatprep.subr.mxu0 0.0
        %750 = vmatpush1.msra.mxu0 0.0
        %751 = vmatprep.subr.mxu0 0.0
        %752 = vmatpush1.msra.mxu0 0.0
        %753 = vmatprep.subr.mxu0 0.0
        %754 = vmatpush1.msra.mxu0 0.0
        %755 = vmatprep.subr.mxu0 0.0
        %756 = vmatpush1.msra.mxu0 0.0
        %757 = vmatprep.subr.mxu0 0.0
        %758 = vmatpush1.msra.mxu0 0.0
        %759 = vmatprep.subr.mxu0 0.0
        %760 = vmatpush1.msra.mxu0 0.0
        %761 = vmatprep.subr.mxu0 0.0
        %762 = vmatpush1.msra.mxu0 0.0
        %763 = vmatprep.subr.mxu0 0.0
        %764 = vmatpush1.msra.mxu0 0.0
        %765 = vmatprep.subr.mxu0 0.0
        %766 = vmatpush1.msra.mxu0 0.0
        %767 = vmatprep.subr.mxu0 0.0
        %768 = vmatpush1.msra.mxu0 0.0
        %769 = vmatprep.subr.mxu0 0.0
        %770 = vmatpush1.msra.mxu0 0.0
        %771 = vmatprep.subr.mxu0 0.0
        %772 = vmatpush1.msra.mxu0 0.0
        %773 = vmatprep.subr.mxu0 0.0
        %774 = vmatpush1.msra.mxu0 0.0
        %775 = vmatprep.subr.mxu0 0.0
        %776 = vmatpush1.msra.mxu0 0.0
        %777 = vmatprep.subr.mxu0 0.0
        %778 = vmatpush1.msra.mxu0 0.0
        %779 = vmatprep.subr.mxu0 0.0
        %780 = vmatpush1.msra.mxu0 0.0
        %781 = vmatprep.subr.mxu0 0.0
        %782 = vmatpush1.msra.mxu0 0.0
        %783 = vmatprep.subr.mxu0 0.0
        %784 = vmatpush1.msra.mxu0 0.0
        %785 = vmatprep.subr.mxu0 0.0
        %786 = vmatpush1.msra.mxu0 0.0
        %787 = vmatprep.subr.mxu0 0.0
        %788 = vmatpush1.msra.mxu0 0.0
        %789 = vmatprep.subr.mxu0 0.0
        %790 = vmatpush1.msra.mxu0 0.0
        %791 = vmatprep.subr.mxu0 0.0
        %792 = vmatpush1.msra.mxu0 0.0
        %793 = vmatprep.subr.mxu0 0.0
        %794 = vmatpush1.msra.mxu0 0.0
        %795 = vmatprep.subr.mxu0 0.0
        %796 = vmatpush1.msra.mxu0 0.0
        %797 = vmatprep.subr.mxu0 0.0
        %798 = vmatpush1.msra.mxu0 0.0
        %799 = vmatprep.mubr.f32.mxu0 0.0
        %800 = vmatmul.mubr.f32.gmra.mrb[0].mxu0 %v559
        %v801 = vpop.f32.mrb[0].mxu0
        %v802 = vadd.f32 0.0, %v801
        %v803 = vpop.f32.mrb[0].mxu0
        %804 = vmatprep.mubr.f32.mxu0 0.0
        %805 = vmatmul.mubr.f32.gmra.mrb[0].mxu0 %v562
        %v806 = vpop.f32.mrb[0].mxu0
        %v807 = vadd.f32 0.0, %v806
        %v808 = vpop.f32.mrb[0].mxu0
        %809 = vmatprep.mubr.f32.mxu0 0.0
        %810 = vmatmul.mubr.f32.gmra.mrb[0].mxu0 %v565
        %v811 = vpop.f32.mrb[0].mxu0
        %v812 = vadd.f32 0.0, %v811
        %v813 = vpop.f32.mrb[0].mxu0
        %814 = vdwg.mxu0
        %s815 = scalar_lea.vmem %s248, 72
        %816 = vst.msk [vmem:[%s815] sm:$0xff] %vm434, %v802
        %817 = vst.msk [vmem:[%s815 + $0x8] sm:$0xff] %vm434, %v807
        %818 = vst.msk [vmem:[%s815 + $0x10] sm:$0xff] %vm434, %v812
        %s819 = smul.u32 3, %s21
        %p820 = scmp.lt.s32.totalorder %s20, 1
        %s821 = scalar_select %p820, %s20, 1
        %p822 = scmp.lt.s32.totalorder %s819, 2
        %s823 = scalar_select %p822, %s819, 2
        %s824 = smul.addr %s821, 12
        %s825 = sadd.s32 %s823, %s824
        %s826 = smul.addr %s825, 8
        %s827 = scalar_lea.vmem %s3, %s826
        // Predicated region
        $region45: #{resize_forward.1} parent=31 // pred_check
          %p828 = pneg %p121
        $region46: #{resize_forward.1} parent=31 // pred_check_branch
          %830 = sbr.rel (%p828) target = $region48
        $region47: #{resize_forward.1} parent=31 // pred_region
          %s831 = smul.u32 3, %s21
        $region48: #{resize_forward.1} parent=31 // pred_fallthru
          _
      $region32: #{resize_forward.1} parent=5 // pred_fallthru
        _
      %p832 = scmp.le.s32.totalorder 2, %s11
      // Predicated region
      $region49: #{resize_forward.1} parent=5 // pred_check
        %p833 = pneg %p832
      $region50: #{resize_forward.1} parent=5 // pred_check_branch
        %835 = sbr.rel (%p833) target = $region52
      $region51: #{resize_forward.1} parent=5 // pred_region
        %s836 = ssub.s32 %s11, 2
        // Predicated region
        $region53: #{resize_forward.1} parent=51 // pred_check
          %p837 = pneg %p127
        $region54: #{resize_forward.1} parent=51 // pred_check_branch
          %839 = sbr.rel (%p837) target = $region56
        $region55: #{resize_forward.1} parent=51 // pred_region
          %s840 = smul.u32 3, %s23
          %p841 = scmp.lt.s32.totalorder %s22, 1
          %s842 = scalar_select %p841, %s22, 1
          %p843 = scmp.lt.s32.totalorder %s840, 2
          %s844 = scalar_select %p843, %s840, 2
          %s845 = smul.addr %s842, 12
          %s846 = sadd.s32 %s844, %s845
          %s847 = smul.addr %s846, 8
          %s848 = scalar_lea.vmem %s3, %s847
        $region56: #{resize_forward.1} parent=51 // pred_fallthru
          _
      $region52: #{resize_forward.1} parent=5 // pred_fallthru
        _
    $region6: #{resize_forward.1} parent=1 // loop_footer
      %s15 = sadd.s32 1, %s11
    $region7: #{resize_forward.1} parent=1 // loop_footer_branch
      %10 = sbr.rel target = $region3
    $region8: #{resize_forward.1} parent=1 // loop_exit
      _
    %849 = vsyncpa [#allocation3], 1
    %s850 = scalar_lea.sflag [#allocation3], 1
    %851 = vsyncpa %s850, 1
    %852 = vsyncpa [#allocation5], 1

</llo_original>
